<compile_context>
chip_gen: v7x
topology: tpu7x:2x2x1
jax: 0.10.0
libtpu: 0.0.40
codegen_flags: <defaults>
</compile_context>

<pallas_src>
import numpy as np
import jax
import jax.numpy as jnp
from jax.experimental import pallas as pl
from jax.experimental.pallas import tpu as pltpu


def _cdiv(a, b):
    return -(-a // b)


def _round_up(n, m):
    return _cdiv(n, m) * m


def fourier_kernel(x_ref, freqs_ref, amp_ref, phase_ref, b_ref, o_ref):
    # x_ref:     (TR, CH)  batch elements, row-major, CH=128 lanes per row
    # freqs_ref: (H, 1)    2*pi * freqs                     (VMEM resident)
    # amp_ref:   (H, 1)    A_h   = sqrt(w_sin^2 + w_cos^2)  (VMEM resident)
    # phase_ref: (H, 1)    phi_h = atan2(w_cos, w_sin)      (VMEM resident)
    # b_ref:     (1, 1)    bias scalar in SMEM
    # o_ref:     (TR, CH)  lane-dense output tile
    freqs = freqs_ref[...]          # (H, 1)
    amp = amp_ref[...]              # (H, 1)
    phase = phase_ref[...]          # (H, 1)
    bias = b_ref[0, 0]
    n_rows = x_ref.shape[0]         # static (block shape)

    # One 128-lane chunk of the batch per iteration: intermediates are only
    # (H, 128) f32, keeping vreg pressure far below 64 while the whole grid
    # step still covers up to 8192 batch elements.
    @pl.loop(0, n_rows)
    def _(r):
        xr = x_ref[pl.ds(r, 1), :]                       # (1, CH)
        # x @ freqs with K=1 is an outer product -> broadcast multiply (VPU),
        # 2*pi already folded into freqs; add the harmonic phase.
        theta = freqs * xr + phase                       # (H, CH)
        # w_sin*sin + w_cos*cos  ==  A * sin(theta + phi): single sin per (h,b)
        acc = jnp.sum(amp * jnp.sin(theta), axis=0, keepdims=True)  # (1, CH)
        o_ref[pl.ds(r, 1), :] = (acc + bias).astype(o_ref.dtype)


def fourier_net_forward(x, freqs, w, b, *, lane_chunk=128, rows_per_step=64):
    """x: (B, 1) f32, freqs: (1, H) f32, w: (1, 2H) torch-layout, b: (1,)."""
    B = x.shape[0]
    H = freqs.shape[1]
    O = w.shape[0]
    assert x.shape[1] == 1, "FourierNet forward requires x last dim == 1"
    assert O == 1, "kernel specialized for output_size == 1"
    assert w.shape[1] == 2 * H

    CH = lane_chunk                      # 128 lanes per row
    NR = _cdiv(B, CH)                    # rows of CH batch elements

    if NR <= 8:
        # Tiny batch: one grid step, block == full (row-padded) array.
        TR = NR
        num_steps = 1
    else:
        # Aim for `rows_per_step` rows (8192 elems) per step, but keep >= 2
        # steps so the "parallel" batch axis can shard over v7x's 2 TCs.
        num_steps = max(_cdiv(NR, rows_per_step), 2)
        TR = _round_up(_cdiv(NR, num_steps), 8)   # sublane-aligned block rows
        num_steps = _cdiv(NR, TR)

    NR_pad = TR * num_steps
    B_pad = NR_pad * CH

    # --- parameter prep (plain JAX glue, done once) --------------------------
    x_2d = jnp.pad(x.astype(jnp.float32)[:, 0], (0, B_pad - B)).reshape(NR_pad, CH)

    w_sin = w[0, :H].astype(jnp.float32)
    w_cos = w[0, H:].astype(jnp.float32)
    freqs2pi = (jnp.float32(2.0 * np.pi) * freqs[0].astype(jnp.float32)).reshape(H, 1)
    amp = jnp.sqrt(w_sin * w_sin + w_cos * w_cos).reshape(H, 1)
    phase = jnp.arctan2(w_cos, w_sin).reshape(H, 1)
    b_sc = b.reshape(1, 1).astype(jnp.float32)

    const = lambda shape: pl.BlockSpec(shape, lambda i: (0, 0))

    cost = pl.CostEstimate(
        flops=4 * B_pad * H,                 # theta mul+add, amp mul, reduce add
        transcendentals=B_pad * H,           # one sin per (h, b)
        bytes_accessed=4 * (2 * B_pad + 3 * H + 1),
    )

    out_2d = pl.pallas_call(
        fourier_kernel,
        out_shape=jax.ShapeDtypeStruct((NR_pad, CH), jnp.float32),
        grid=(num_steps,),
        in_specs=[
            pl.BlockSpec((TR, CH), lambda i: (i, 0)),              # x rows
            const((H, 1)),                                         # 2*pi*freqs
            const((H, 1)),                                         # amplitude
            const((H, 1)),                                         # phase
            pl.BlockSpec((1, 1), lambda i: (0, 0),
                         memory_space=pltpu.MemorySpace.SMEM),     # bias scalar
        ],
        out_specs=pl.BlockSpec((TR, CH), lambda i: (i, 0)),
        compiler_params=pltpu.CompilerParams(
            dimension_semantics=("parallel",),
        ),
        cost_estimate=cost,
    )(x_2d, freqs2pi, amp, phase, b_sc)

    # Back to PyTorch layout (B, 1), dropping the padding.
    return out_2d.reshape(-1)[:B].reshape(B, 1)


def init_params(key, hidden_size=50, output_size=1):
    # freqs: torch.linspace(1.0, 10.0, hidden_size).reshape(1, -1)
    freqs = jnp.linspace(1.0, 10.0, hidden_size, dtype=jnp.float32).reshape(1, -1)

    # nn.Linear(2H, O) default init: U(-1/sqrt(fan_in), 1/sqrt(fan_in))
    fan_in = 2 * hidden_size
    bound = 1.0 / np.sqrt(fan_in)
    kw, kb = jax.random.split(key)
    w = jax.random.uniform(kw, (output_size, fan_in), jnp.float32, -bound, bound)
    b = jax.random.uniform(kb, (output_size,), jnp.float32, -bound, bound)
    return freqs, w, b


def reference_forward(x, freqs, w, b):
    x_proj = x @ freqs
    sin_feat = jnp.sin(2.0 * np.pi * x_proj)
    cos_feat = jnp.cos(2.0 * np.pi * x_proj)
    feat = jnp.concatenate([sin_feat, cos_feat], axis=-1)
    return feat @ w.T + b


if __name__ == "__main__":
    H, O = 50, 1
    key = jax.random.PRNGKey(0)
    k_params, k_x = jax.random.split(key)
    freqs, w, b = init_params(k_params, hidden_size=H, output_size=O)

    # B=8: single row, block == full array.  B=300: pad-trim path (NR=3).
    # B=1536: multi-step grid (2 parallel steps, TR=8) + last-tile padding.
    for B in (8, 300, 1536):
        x = jax.random.normal(jax.random.fold_in(k_x, B), (B, 1), dtype=jnp.float32)

        out = jax.block_until_ready(fourier_net_forward(x, freqs, w, b))
        ref = reference_forward(x, freqs, w, b)

        # Tolerance slightly loosened vs 1e-5: 2*pi is folded into freqs and
        # sin+cos is folded into A*sin(theta+phi), so the transcendental
        # arguments differ from the reference by a couple of f32 roundings.
        np.testing.assert_allclose(np.asarray(out), np.asarray(ref),
                                   rtol=1e-4, atol=2e-4)

    print("KERNEL_OK")
</pallas_src>

<mosaic_0001>
module attributes {stable_mosaic.version = 11 : i64} {
  func.func @fourier_kernel(%arg0: i32, %arg1: memref<1x128xf32, #tpu.memory_space<vmem>>, %arg2: memref<50x1xf32, #tpu.memory_space<vmem>>, %arg3: memref<50x1xf32, #tpu.memory_space<vmem>>, %arg4: memref<50x1xf32, #tpu.memory_space<vmem>>, %arg5: memref<1x1xf32, #tpu.memory_space<smem>>, %arg6: memref<1x128xf32, #tpu.memory_space<vmem>>) attributes {dimension_semantics = [#tpu.dimension_semantics<parallel>], iteration_bounds = array<i64: 1>, scalar_prefetch = 0 : i64, scratch_operands = 0 : i64, tpu.core_type = #tpu.core_type<tc>, window_params = [{transform_indices = @transform_0, window_bounds = array<i64: 1, 128>}, {pipeline_mode = #tpu.pipeline_mode<synchronous>, transform_indices = @transform_1, window_bounds = array<i64: 50, 1>}, {pipeline_mode = #tpu.pipeline_mode<synchronous>, transform_indices = @transform_2, window_bounds = array<i64: 50, 1>}, {pipeline_mode = #tpu.pipeline_mode<synchronous>, transform_indices = @transform_3, window_bounds = array<i64: 50, 1>}, {transform_indices = @transform_4, window_bounds = array<i64: 1, 1>}, {transform_indices = @transform_5, window_bounds = array<i64: 1, 128>}]} {
    %c0 = arith.constant 0 : index
    %c0_0 = arith.constant 0 : index
    %0 = vector.load %arg2[%c0, %c0_0] : memref<50x1xf32, #tpu.memory_space<vmem>>, vector<50x1xf32>
    %c0_1 = arith.constant 0 : index
    %c0_2 = arith.constant 0 : index
    %1 = vector.load %arg3[%c0_1, %c0_2] : memref<50x1xf32, #tpu.memory_space<vmem>>, vector<50x1xf32>
    %c0_3 = arith.constant 0 : index
    %c0_4 = arith.constant 0 : index
    %2 = vector.load %arg4[%c0_3, %c0_4] : memref<50x1xf32, #tpu.memory_space<vmem>>, vector<50x1xf32>
    %c0_5 = arith.constant 0 : index
    %c0_6 = arith.constant 0 : index
    %3 = memref.load %arg5[%c0_5, %c0_6] : memref<1x1xf32, #tpu.memory_space<smem>>
    %c0_i32 = arith.constant 0 : i32
    %c1_i32 = arith.constant 1 : i32
    %4 = arith.muli %c0_i32, %c1_i32 : i32
    %c0_i32_7 = arith.constant 0 : i32
    %5 = arith.addi %c0_i32_7, %4 : i32
    %6 = arith.index_cast %5 : i32 to index
    %c0_8 = arith.constant 0 : index
    %7 = vector.load %arg1[%6, %c0_8] : memref<1x128xf32, #tpu.memory_space<vmem>>, vector<1x128xf32>
    %8 = vector.broadcast %0 : vector<50x1xf32> to vector<50x128xf32>
    %9 = vector.broadcast %7 : vector<1x128xf32> to vector<50x128xf32>
    %10 = arith.mulf %8, %9 : vector<50x128xf32>
    %11 = vector.broadcast %2 : vector<50x1xf32> to vector<50x128xf32>
    %12 = arith.addf %10, %11 : vector<50x128xf32>
    %13 = math.sin %12 : vector<50x128xf32>
    %14 = vector.broadcast %1 : vector<50x1xf32> to vector<50x128xf32>
    %15 = arith.mulf %14, %13 : vector<50x128xf32>
    %cst = arith.constant dense<0.000000e+00> : vector<128xf32>
    %16 = vector.multi_reduction <add>, %15, %cst [0] : vector<50x128xf32> to vector<128xf32>
    %17 = vector.shape_cast %16 : vector<128xf32> to vector<1x128xf32>
    %18 = vector.broadcast %3 : f32 to vector<1x128xf32>
    %19 = arith.addf %17, %18 : vector<1x128xf32>
    %20 = arith.index_cast %5 : i32 to index
    %c0_9 = arith.constant 0 : index
    %21 = vector.load %arg6[%20, %c0_9] : memref<1x128xf32, #tpu.memory_space<vmem>>, vector<1x128xf32>
    tpu.vector_store %arg6[%20, %c0_9], %19 {strides = array<i32>} : memref<1x128xf32, #tpu.memory_space<vmem>>, vector<1x128xf32>,
    %c1_i32_10 = arith.constant 1 : i32
    return
  }
  func.func @transform_0(%arg0: i32) -> (i32, i32) {
    %c0_i32 = arith.constant 0 : i32
    %c0_i32_0 = arith.constant 0 : i32
    return %arg0, %c0_i32 : i32, i32
  }
  func.func @transform_1(%arg0: i32) -> (i32, i32) {
    %c0_i32 = arith.constant 0 : i32
    %c0_i32_0 = arith.constant 0 : i32
    %c0_i32_1 = arith.constant 0 : i32
    return %c0_i32, %c0_i32_0 : i32, i32
  }
  func.func @transform_2(%arg0: i32) -> (i32, i32) {
    %c0_i32 = arith.constant 0 : i32
    %c0_i32_0 = arith.constant 0 : i32
    %c0_i32_1 = arith.constant 0 : i32
    return %c0_i32, %c0_i32_0 : i32, i32
  }
  func.func @transform_3(%arg0: i32) -> (i32, i32) {
    %c0_i32 = arith.constant 0 : i32
    %c0_i32_0 = arith.constant 0 : i32
    %c0_i32_1 = arith.constant 0 : i32
    return %c0_i32, %c0_i32_0 : i32, i32
  }
  func.func @transform_4(%arg0: i32) -> (i32, i32) {
    %c0_i32 = arith.constant 0 : i32
    %c0_i32_0 = arith.constant 0 : i32
    %c0_i32_1 = arith.constant 0 : i32
    return %c0_i32, %c0_i32_0 : i32, i32
  }
  func.func @transform_5(%arg0: i32) -> (i32, i32) {
    %c0_i32 = arith.constant 0 : i32
    %c0_i32_0 = arith.constant 0 : i32
    return %arg0, %c0_i32 : i32, i32
  }
}

</mosaic_0001>

<llo_original>
// kernel: tpu_custom_call.1
$region0: #{tpu_custom_call.1}
  #allocation0 [shape = 'u32[]', space=smem, size = 0x4, offset = 0x4, fixed_abs, tag = 'smem constant byte address 0x4 - core index']
  #allocation1 [shape = 'u32[144,128]{1,0:T(1,128)}', space=vmem, size = 0x12000, scoped, tag = 'internal scratch']
  #allocation2 [shape = 'f32[1,1]{1,0:T(1,128)S(6)}', space=smem, size = 0x200, scoped, tag = 'scoped memory for tpu_custom_call.1']
  %s0 = inlined_call_operand.vmem [shape: f32[1,128], index: 0, kind: input, shape index: {}]
  %s1 = inlined_call_operand.vmem [shape: f32[50,1], index: 1, kind: input, shape index: {}]
  %s2 = inlined_call_operand.vmem [shape: f32[50,1], index: 2, kind: input, shape index: {}]
  %s3 = inlined_call_operand.vmem [shape: f32[50,1], index: 3, kind: input, shape index: {}]
  %s4 = inlined_call_operand.<no memory space> [shape: f32[1,1], index: 4, kind: input, shape index: {}]
  %s5 = inlined_call_operand.hbm [shape: f32[1,128], index: 5, kind: output, shape index: {}]
  %s6 = sld [smem:[#allocation0]]
  $region30: #{tpu_custom_call.1} parent=0
    _
  %s8 = ssub.s32 1, %s6
  %s9 = scalar_select 0, %s8, %s6
  %10 = sst [smem:[#allocation2]] %s4
  $region1: #{tpu_custom_call.1} parent=0
    #allocation3 [shape = 'u8[512]{0}', space=vmem, size = 0x400, scoped, tag = 'output window, operand 0, single buffered']
    #allocation4 [shape = 's32[1]{0}', space=sflag, size = 0x4, scoped, tag = 'scoped memory for tpu_custom_call.1']
    %11 = vsyncpa [#allocation4], 0
    // Predicated region
    $region2: #{tpu_custom_call.1} parent=1 // pred_check
      _
    $region3: #{tpu_custom_call.1} parent=1 // pred_check_branch
      %13 = sbr.rel (0) target = $region5
    $region4: #{tpu_custom_call.1} parent=1 // pred_region
      _
    $region5: #{tpu_custom_call.1} parent=1 // pred_fallthru
      _
    // Predicated region
    $region6: #{tpu_custom_call.1} parent=1 // pred_check
      _
    $region7: #{tpu_custom_call.1} parent=1 // pred_check_branch
      %15 = sbr.rel (0) target = $region9
    $region8: #{tpu_custom_call.1} parent=1 // pred_region
      _
    $region9: #{tpu_custom_call.1} parent=1 // pred_fallthru
      _
    // Predicated region
    $region10: #{tpu_custom_call.1} parent=1 // pred_check
      _
    $region11: #{tpu_custom_call.1} parent=1 // pred_check_branch
      %17 = sbr.rel (0) target = $region13
    $region12: #{tpu_custom_call.1} parent=1 // pred_region
      _
    $region13: #{tpu_custom_call.1} parent=1 // pred_fallthru
      _
    // Predicated region
    $region14: #{tpu_custom_call.1} parent=1 // pred_check
      _
    $region15: #{tpu_custom_call.1} parent=1 // pred_check_branch
      %19 = sbr.rel (0) target = $region17
    $region16: #{tpu_custom_call.1} parent=1 // pred_region
      _
    $region17: #{tpu_custom_call.1} parent=1 // pred_fallthru
      _
    // Predicated region
    $region18: #{tpu_custom_call.1} parent=1 // pred_check
      _
    $region19: #{tpu_custom_call.1} parent=1 // pred_check_branch
      %21 = sbr.rel (0) target = $region21
    $region20: #{tpu_custom_call.1} parent=1 // pred_region
      _
    $region21: #{tpu_custom_call.1} parent=1 // pred_fallthru
      _
    %v22 = vld [vmem:[%s1] sm:$0xff]
    %v23 = vld [vmem:[%s1 + $0x8] sm:$0xff]
    %v24 = vld [vmem:[%s1 + $0x10] sm:$0xff]
    %v25 = vld [vmem:[%s1 + $0x18] sm:$0xff]
    %v26 = vld [vmem:[%s1 + $0x20] sm:$0xff]
    %v27 = vld [vmem:[%s1 + $0x28] sm:$0xff]
    %v28 = vld [vmem:[%s1 + $0x30] sm:$0x3]
    %v29 = vld [vmem:[%s2] sm:$0xff]
    %v30 = vld [vmem:[%s2 + $0x8] sm:$0xff]
    %v31 = vld [vmem:[%s2 + $0x10] sm:$0xff]
    %v32 = vld [vmem:[%s2 + $0x18] sm:$0xff]
    %v33 = vld [vmem:[%s2 + $0x20] sm:$0xff]
    %v34 = vld [vmem:[%s2 + $0x28] sm:$0xff]
    %v35 = vld [vmem:[%s2 + $0x30] sm:$0x3]
    %v36 = vld [vmem:[%s3] sm:$0xff]
    %v37 = vld [vmem:[%s3 + $0x8] sm:$0xff]
    %v38 = vld [vmem:[%s3 + $0x10] sm:$0xff]
    %v39 = vld [vmem:[%s3 + $0x18] sm:$0xff]
    %v40 = vld [vmem:[%s3 + $0x20] sm:$0xff]
    %v41 = vld [vmem:[%s3 + $0x28] sm:$0xff]
    %v42 = vld [vmem:[%s3 + $0x30] sm:$0x3]
    %s43 = sld [smem:[#allocation2]]
    %v44 = vld [vmem:[%s0] sm:$0x1]
    %46 = vset.pattern.permute.xlu0 0
    %47 = vperm.xlu0 %46, %v22
    %v48 = vpop.permute.xlu0 %47
    %51 = vset.pattern.permute.xlu0 0
    %52 = vperm.xlu0 %51, %v23
    %v53 = vpop.permute.xlu0 %52
    %56 = vset.pattern.permute.xlu0 0
    %57 = vperm.xlu0 %56, %v24
    %v58 = vpop.permute.xlu0 %57
    %61 = vset.pattern.permute.xlu0 0
    %62 = vperm.xlu0 %61, %v25
    %v63 = vpop.permute.xlu0 %62
    %66 = vset.pattern.permute.xlu0 0
    %67 = vperm.xlu0 %66, %v26
    %v68 = vpop.permute.xlu0 %67
    %71 = vset.pattern.permute.xlu0 0
    %72 = vperm.xlu0 %71, %v27
    %v73 = vpop.permute.xlu0 %72
    %76 = vset.pattern.permute.xlu0 0
    %77 = vperm.xlu0 %76, %v28
    %v78 = vpop.permute.xlu0 %77
    %v81 = vlaneseq
    %v82 = vshrl.u32 %v81, 7
    %v83 = vsub.s32 0, %v82
    %v84 = vrot.slane %v44, %v83
    %v86 = vmul.f32 %v48, %v84
    %v87 = vmul.f32 %v53, %v84
    %v88 = vmul.f32 %v58, %v84
    %v89 = vmul.f32 %v63, %v84
    %v90 = vmul.f32 %v68, %v84
    %v91 = vmul.f32 %v73, %v84
    %v92 = vmul.f32 %v78, %v84
    %94 = vset.pattern.permute.xlu0 0
    %95 = vperm.xlu0 %94, %v36
    %v96 = vpop.permute.xlu0 %95
    %99 = vset.pattern.permute.xlu0 0
    %100 = vperm.xlu0 %99, %v37
    %v101 = vpop.permute.xlu0 %100
    %104 = vset.pattern.permute.xlu0 0
    %105 = vperm.xlu0 %104, %v38
    %v106 = vpop.permute.xlu0 %105
    %109 = vset.pattern.permute.xlu0 0
    %110 = vperm.xlu0 %109, %v39
    %v111 = vpop.permute.xlu0 %110
    %114 = vset.pattern.permute.xlu0 0
    %115 = vperm.xlu0 %114, %v40
    %v116 = vpop.permute.xlu0 %115
    %119 = vset.pattern.permute.xlu0 0
    %120 = vperm.xlu0 %119, %v41
    %v121 = vpop.permute.xlu0 %120
    %124 = vset.pattern.permute.xlu0 0
    %125 = vperm.xlu0 %124, %v42
    %v126 = vpop.permute.xlu0 %125
    %v128 = vadd.f32 %v86, %v96
    %v129 = vadd.f32 %v87, %v101
    %v130 = vadd.f32 %v88, %v106
    %v131 = vadd.f32 %v89, %v111
    %v132 = vadd.f32 %v90, %v116
    %v133 = vadd.f32 %v91, %v121
    %v134 = vadd.f32 %v92, %v126
    %v135 = vand.u32 2147483647, %v128
    %vm136 = vcmp.le.f32.partialorder %v135, 0.7853982
    %vm137 = vcmp.lt.s32.totalorder %v128, 0
    %v138 = vand.u32 %v128, 2139095040
    %v139 = vshrl.u32 %v138, 23
    %v140 = vsub.s32 %v139, 127
    %v141 = vand.u32 2147483647, %v128
    %v142 = vand.u32 %v141, 8388607
    %v143 = vor.u32 %v142, 8388608
    %v144 = vsub.s32 0, %v143
    %v145 = vadd.s32 %v140, 1
    %vm146 = vcmp.gt.s32.totalorder %v145, 0
    %v147 = vsel %vm146, %v145, 0
    %v148 = vshrl.u32 %v147, 5
    %v149 = vand.u32 %v147, 31
    %v150 = vsub.s32 32, %v149
    %v151 = vshrl.u32 683565275, %v150
    %v152 = vshll.u32 683565275, %v149
    %v153 = vshrl.u32 2475754826, %v150
    %v154 = vor.u32 %v152, %v153
    %v155 = vshll.u32 2475754826, %v149
    %v156 = vshrl.u32 2131351028, %v150
    %v157 = vor.u32 %v155, %v156
    %v158 = vshll.u32 2131351028, %v149
    %v159 = vshrl.u32 2102212464, %v150
    %v160 = vor.u32 %v158, %v159
    %v161 = vshll.u32 2102212464, %v149
    %v162 = vshrl.u32 920167782, %v150
    %v163 = vor.u32 %v161, %v162
    %v164 = vshll.u32 920167782, %v149
    %v165 = vshrl.u32 1326507024, %v150
    %v166 = vor.u32 %v164, %v165
    %vm167 = vcmp.lt.s32.totalorder %v148, 1
    %vm168 = vcmp.lt.s32.totalorder %v148, 2
    %vm169 = vcmp.lt.s32.totalorder %v148, 3
    %vm170 = vcmp.lt.s32.totalorder %v148, 4
    %v171 = vsel %vm167, %v151, %v154
    %v172 = vsel %vm170, %v160, 2102212464
    %v173 = vsel %vm169, %v157, %v172
    %v174 = vsel %vm168, %v171, %v173
    %v175 = vsel %vm167, %v154, %v157
    %v176 = vsel %vm170, %v163, 920167782
    %v177 = vsel %vm169, %v160, %v176
    %v178 = vsel %vm168, %v175, %v177
    %v179 = vsel %vm167, %v157, %v160
    %v180 = vsel %vm170, %v166, 1326507024
    %v181 = vsel %vm169, %v163, %v180
    %v182 = vsel %vm168, %v179, %v181
    %v183 = vshll.u32 %v143, 8
    %v184 = vmul.u32.u64.compose %v183, %v182
    %v185 = vextract.low.u32 %v184
    %v186 = vextract.high.u32 %v184
    %v187 = vmul.u32.u64.compose %v183, %v178
    %v188 = vextract.low.u32 %v187
    %v189 = vextract.high.u32 %v187
    %v190 = vmul.u32 %v183, %v174
    %v191 = vadd.s32 %v186, %v188
    %vm192 = vc.u32 %v186, %v188
    %v193 = vadd.s32 %v189, 1
    %v194 = vsel %vm192, %v193, %v189
    %v195 = vadd.s32 %v190, %v194
    %v196 = vadd.s32 %v195, 536870912
    %v197 = vshrl.u32 %v196, 30
    %v198 = vshll.u32 %v197, 30
    %v199 = vsub.s32 %v195, %v198
    %vm200 = vcmp.lt.s32.totalorder %v199, 0
    %v201 = vsub.s32 0, %v199
    %v202 = vsel %vm200, %v201, %v199
    %v203 = vclz %v202
    %v204 = vsub.s32 %v203, 2
    %vm205 = vcmp.gt.s32.totalorder 0, %v204
    %v206 = vsel %vm205, 0, %v204
    %v207 = vsub.s32 32, %v206
    %v208 = vshll.u32 %v199, %v206
    %v209 = vshrl.u32 %v191, %v207
    %v210 = vor.u32 %v208, %v209
    %v211 = vsub.s32 4294967266, %v206
    %v212 = vadd.s32 %v211, 127
    %v213 = vshll.u32 %v212, 23
    %v214 = vor.u32 4788187, %v213
    %v215 = vand.u32 2147483647, %v214
    %v217 = vcvt.s32.f32 %v210
    %v218 = vmul.f32 %v217, %v215
    %v219 = vxor.u32 %v218, 2147483648
    %v220 = vsel %vm137, %v219, %v218
    %v221 = vsub.s32 4, %v197
    %v222 = vsel %vm137, %v221, %v197
    %v223 = vsel %vm136, %v128, %v220
    %v224 = vsel %vm136, 0, %v222
    %v225 = vcosq.f32.pop %v223
    %v226 = vsinq.f32.pop %v223
    %vm227 = vweird.f32 %v128
    %v228 = vadd.s32 %v224, 3
    %v229 = vand.u32 %v228, 3
    %vm230 = vcmp.lt.s32.totalorder %v229, 2
    %vm231 = vcmp.eq.s32.totalorder %v229, 0
    %v232 = vxor.u32 %v226, 2147483648
    %v233 = vsel %vm231, %v225, %v232
    %vm234 = vcmp.eq.s32.totalorder %v229, 2
    %v235 = vxor.u32 %v225, 2147483648
    %v236 = vsel %vm234, %v235, %v226
    %v237 = vsel %vm230, %v233, %v236
    %v238 = vsel %vm227, nan, %v237
    %v239 = vand.u32 2147483647, %v129
    %vm240 = vcmp.le.f32.partialorder %v239, 0.7853982
    %vm241 = vcmp.lt.s32.totalorder %v129, 0
    %v242 = vand.u32 %v129, 2139095040
    %v243 = vshrl.u32 %v242, 23
    %v244 = vsub.s32 %v243, 127
    %v245 = vand.u32 2147483647, %v129
    %v246 = vand.u32 %v245, 8388607
    %v247 = vor.u32 %v246, 8388608
    %v248 = vsub.s32 0, %v247
    %v249 = vadd.s32 %v244, 1
    %vm250 = vcmp.gt.s32.totalorder %v249, 0
    %v251 = vsel %vm250, %v249, 0
    %v252 = vshrl.u32 %v251, 5
    %v253 = vand.u32 %v251, 31
    %v254 = vsub.s32 32, %v253
    %v255 = vshrl.u32 683565275, %v254
    %v256 = vshll.u32 683565275, %v253
    %v257 = vshrl.u32 2475754826, %v254
    %v258 = vor.u32 %v256, %v257
    %v259 = vshll.u32 2475754826, %v253
    %v260 = vshrl.u32 2131351028, %v254
    %v261 = vor.u32 %v259, %v260
    %v262 = vshll.u32 2131351028, %v253
    %v263 = vshrl.u32 2102212464, %v254
    %v264 = vor.u32 %v262, %v263
    %v265 = vshll.u32 2102212464, %v253
    %v266 = vshrl.u32 920167782, %v254
    %v267 = vor.u32 %v265, %v266
    %v268 = vshll.u32 920167782, %v253
    %v269 = vshrl.u32 1326507024, %v254
    %v270 = vor.u32 %v268, %v269
    %vm271 = vcmp.lt.s32.totalorder %v252, 1
    %vm272 = vcmp.lt.s32.totalorder %v252, 2
    %vm273 = vcmp.lt.s32.totalorder %v252, 3
    %vm274 = vcmp.lt.s32.totalorder %v252, 4
    %v275 = vsel %vm271, %v255, %v258
    %v276 = vsel %vm274, %v264, 2102212464
    %v277 = vsel %vm273, %v261, %v276
    %v278 = vsel %vm272, %v275, %v277
    %v279 = vsel %vm271, %v258, %v261
    %v280 = vsel %vm274, %v267, 920167782
    %v281 = vsel %vm273, %v264, %v280
    %v282 = vsel %vm272, %v279, %v281
    %v283 = vsel %vm271, %v261, %v264
    %v284 = vsel %vm274, %v270, 1326507024
    %v285 = vsel %vm273, %v267, %v284
    %v286 = vsel %vm272, %v283, %v285
    %v287 = vshll.u32 %v247, 8
    %v288 = vmul.u32.u64.compose %v287, %v286
    %v289 = vextract.low.u32 %v288
    %v290 = vextract.high.u32 %v288
    %v291 = vmul.u32.u64.compose %v287, %v282
    %v292 = vextract.low.u32 %v291
    %v293 = vextract.high.u32 %v291
    %v294 = vmul.u32 %v287, %v278
    %v295 = vadd.s32 %v290, %v292
    %vm296 = vc.u32 %v290, %v292
    %v297 = vadd.s32 %v293, 1
    %v298 = vsel %vm296, %v297, %v293
    %v299 = vadd.s32 %v294, %v298
    %v300 = vadd.s32 %v299, 536870912
    %v301 = vshrl.u32 %v300, 30
    %v302 = vshll.u32 %v301, 30
    %v303 = vsub.s32 %v299, %v302
    %vm304 = vcmp.lt.s32.totalorder %v303, 0
    %v305 = vsub.s32 0, %v303
    %v306 = vsel %vm304, %v305, %v303
    %v307 = vclz %v306
    %v308 = vsub.s32 %v307, 2
    %vm309 = vcmp.gt.s32.totalorder 0, %v308
    %v310 = vsel %vm309, 0, %v308
    %v311 = vsub.s32 32, %v310
    %v312 = vshll.u32 %v303, %v310
    %v313 = vshrl.u32 %v295, %v311
    %v314 = vor.u32 %v312, %v313
    %v315 = vsub.s32 4294967266, %v310
    %v316 = vadd.s32 %v315, 127
    %v317 = vshll.u32 %v316, 23
    %v318 = vor.u32 4788187, %v317
    %v319 = vand.u32 2147483647, %v318
    %v321 = vcvt.s32.f32 %v314
    %v322 = vmul.f32 %v321, %v319
    %v323 = vxor.u32 %v322, 2147483648
    %v324 = vsel %vm241, %v323, %v322
    %v325 = vsub.s32 4, %v301
    %v326 = vsel %vm241, %v325, %v301
    %v327 = vsel %vm240, %v129, %v324
    %v328 = vsel %vm240, 0, %v326
    %v329 = vcosq.f32.pop %v327
    %v330 = vsinq.f32.pop %v327
    %vm331 = vweird.f32 %v129
    %v332 = vadd.s32 %v328, 3
    %v333 = vand.u32 %v332, 3
    %vm334 = vcmp.lt.s32.totalorder %v333, 2
    %vm335 = vcmp.eq.s32.totalorder %v333, 0
    %v336 = vxor.u32 %v330, 2147483648
    %v337 = vsel %vm335, %v329, %v336
    %vm338 = vcmp.eq.s32.totalorder %v333, 2
    %v339 = vxor.u32 %v329, 2147483648
    %v340 = vsel %vm338, %v339, %v330
    %v341 = vsel %vm334, %v337, %v340
    %v342 = vsel %vm331, nan, %v341
    %v343 = vand.u32 2147483647, %v130
    %vm344 = vcmp.le.f32.partialorder %v343, 0.7853982
    %vm345 = vcmp.lt.s32.totalorder %v130, 0
    %v346 = vand.u32 %v130, 2139095040
    %v347 = vshrl.u32 %v346, 23
    %v348 = vsub.s32 %v347, 127
    %v349 = vand.u32 2147483647, %v130
    %v350 = vand.u32 %v349, 8388607
    %v351 = vor.u32 %v350, 8388608
    %v352 = vsub.s32 0, %v351
    %v353 = vadd.s32 %v348, 1
    %vm354 = vcmp.gt.s32.totalorder %v353, 0
    %v355 = vsel %vm354, %v353, 0
    %v356 = vshrl.u32 %v355, 5
    %v357 = vand.u32 %v355, 31
    %v358 = vsub.s32 32, %v357
    %v359 = vshrl.u32 683565275, %v358
    %v360 = vshll.u32 683565275, %v357
    %v361 = vshrl.u32 2475754826, %v358
    %v362 = vor.u32 %v360, %v361
    %v363 = vshll.u32 2475754826, %v357
    %v364 = vshrl.u32 2131351028, %v358
    %v365 = vor.u32 %v363, %v364
    %v366 = vshll.u32 2131351028, %v357
    %v367 = vshrl.u32 2102212464, %v358
    %v368 = vor.u32 %v366, %v367
    %v369 = vshll.u32 2102212464, %v357
    %v370 = vshrl.u32 920167782, %v358
    %v371 = vor.u32 %v369, %v370
    %v372 = vshll.u32 920167782, %v357
    %v373 = vshrl.u32 1326507024, %v358
    %v374 = vor.u32 %v372, %v373
    %vm375 = vcmp.lt.s32.totalorder %v356, 1
    %vm376 = vcmp.lt.s32.totalorder %v356, 2
    %vm377 = vcmp.lt.s32.totalorder %v356, 3
    %vm378 = vcmp.lt.s32.totalorder %v356, 4
    %v379 = vsel %vm375, %v359, %v362
    %v380 = vsel %vm378, %v368, 2102212464
    %v381 = vsel %vm377, %v365, %v380
    %v382 = vsel %vm376, %v379, %v381
    %v383 = vsel %vm375, %v362, %v365
    %v384 = vsel %vm378, %v371, 920167782
    %v385 = vsel %vm377, %v368, %v384
    %v386 = vsel %vm376, %v383, %v385
    %v387 = vsel %vm375, %v365, %v368
    %v388 = vsel %vm378, %v374, 1326507024
    %v389 = vsel %vm377, %v371, %v388
    %v390 = vsel %vm376, %v387, %v389
    %v391 = vshll.u32 %v351, 8
    %v392 = vmul.u32.u64.compose %v391, %v390
    %v393 = vextract.low.u32 %v392
    %v394 = vextract.high.u32 %v392
    %v395 = vmul.u32.u64.compose %v391, %v386
    %v396 = vextract.low.u32 %v395
    %v397 = vextract.high.u32 %v395
    %v398 = vmul.u32 %v391, %v382
    %v399 = vadd.s32 %v394, %v396
    %vm400 = vc.u32 %v394, %v396
    %v401 = vadd.s32 %v397, 1
    %v402 = vsel %vm400, %v401, %v397
    %v403 = vadd.s32 %v398, %v402
    %v404 = vadd.s32 %v403, 536870912
    %v405 = vshrl.u32 %v404, 30
    %v406 = vshll.u32 %v405, 30
    %v407 = vsub.s32 %v403, %v406
    %vm408 = vcmp.lt.s32.totalorder %v407, 0
    %v409 = vsub.s32 0, %v407
    %v410 = vsel %vm408, %v409, %v407
    %v411 = vclz %v410
    %v412 = vsub.s32 %v411, 2
    %vm413 = vcmp.gt.s32.totalorder 0, %v412
    %v414 = vsel %vm413, 0, %v412
    %v415 = vsub.s32 32, %v414
    %v416 = vshll.u32 %v407, %v414
    %v417 = vshrl.u32 %v399, %v415
    %v418 = vor.u32 %v416, %v417
    %v419 = vsub.s32 4294967266, %v414
    %v420 = vadd.s32 %v419, 127
    %v421 = vshll.u32 %v420, 23
    %v422 = vor.u32 4788187, %v421
    %v423 = vand.u32 2147483647, %v422
    %v425 = vcvt.s32.f32 %v418
    %v426 = vmul.f32 %v425, %v423
    %v427 = vxor.u32 %v426, 2147483648
    %v428 = vsel %vm345, %v427, %v426
    %v429 = vsub.s32 4, %v405
    %v430 = vsel %vm345, %v429, %v405
    %v431 = vsel %vm344, %v130, %v428
    %v432 = vsel %vm344, 0, %v430
    %v433 = vcosq.f32.pop %v431
    %v434 = vsinq.f32.pop %v431
    %vm435 = vweird.f32 %v130
    %v436 = vadd.s32 %v432, 3
    %v437 = vand.u32 %v436, 3
    %vm438 = vcmp.lt.s32.totalorder %v437, 2
    %vm439 = vcmp.eq.s32.totalorder %v437, 0
    %v440 = vxor.u32 %v434, 2147483648
    %v441 = vsel %vm439, %v433, %v440
    %vm442 = vcmp.eq.s32.totalorder %v437, 2
    %v443 = vxor.u32 %v433, 2147483648
    %v444 = vsel %vm442, %v443, %v434
    %v445 = vsel %vm438, %v441, %v444
    %v446 = vsel %vm435, nan, %v445
    %v447 = vand.u32 2147483647, %v131
    %vm448 = vcmp.le.f32.partialorder %v447, 0.7853982
    %vm449 = vcmp.lt.s32.totalorder %v131, 0
    %v450 = vand.u32 %v131, 2139095040
    %v451 = vshrl.u32 %v450, 23
    %v452 = vsub.s32 %v451, 127
    %v453 = vand.u32 2147483647, %v131
    %v454 = vand.u32 %v453, 8388607
    %v455 = vor.u32 %v454, 8388608
    %v456 = vsub.s32 0, %v455
    %v457 = vadd.s32 %v452, 1
    %vm458 = vcmp.gt.s32.totalorder %v457, 0
    %v459 = vsel %vm458, %v457, 0
    %v460 = vshrl.u32 %v459, 5
    %v461 = vand.u32 %v459, 31
    %v462 = vsub.s32 32, %v461
    %v463 = vshrl.u32 683565275, %v462
    %v464 = vshll.u32 683565275, %v461
    %v465 = vshrl.u32 2475754826, %v462
    %v466 = vor.u32 %v464, %v465
    %v467 = vshll.u32 2475754826, %v461
    %v468 = vshrl.u32 2131351028, %v462
    %v469 = vor.u32 %v467, %v468
    %v470 = vshll.u32 2131351028, %v461
    %v471 = vshrl.u32 2102212464, %v462
    %v472 = vor.u32 %v470, %v471
    %v473 = vshll.u32 2102212464, %v461
    %v474 = vshrl.u32 920167782, %v462
    %v475 = vor.u32 %v473, %v474
    %v476 = vshll.u32 920167782, %v461
    %v477 = vshrl.u32 1326507024, %v462
    %v478 = vor.u32 %v476, %v477
    %vm479 = vcmp.lt.s32.totalorder %v460, 1
    %vm480 = vcmp.lt.s32.totalorder %v460, 2
    %vm481 = vcmp.lt.s32.totalorder %v460, 3
    %vm482 = vcmp.lt.s32.totalorder %v460, 4
    %v483 = vsel %vm479, %v463, %v466
    %v484 = vsel %vm482, %v472, 2102212464
    %v485 = vsel %vm481, %v469, %v484
    %v486 = vsel %vm480, %v483, %v485
    %v487 = vsel %vm479, %v466, %v469
    %v488 = vsel %vm482, %v475, 920167782
    %v489 = vsel %vm481, %v472, %v488
    %v490 = vsel %vm480, %v487, %v489
    %v491 = vsel %vm479, %v469, %v472
    %v492 = vsel %vm482, %v478, 1326507024
    %v493 = vsel %vm481, %v475, %v492
    %v494 = vsel %vm480, %v491, %v493
    %v495 = vshll.u32 %v455, 8
    %v496 = vmul.u32.u64.compose %v495, %v494
    %v497 = vextract.low.u32 %v496
    %v498 = vextract.high.u32 %v496
    %v499 = vmul.u32.u64.compose %v495, %v490
    %v500 = vextract.low.u32 %v499
    %v501 = vextract.high.u32 %v499
    %v502 = vmul.u32 %v495, %v486
    %v503 = vadd.s32 %v498, %v500
    %vm504 = vc.u32 %v498, %v500
    %v505 = vadd.s32 %v501, 1
    %v506 = vsel %vm504, %v505, %v501
    %v507 = vadd.s32 %v502, %v506
    %v508 = vadd.s32 %v507, 536870912
    %v509 = vshrl.u32 %v508, 30
    %v510 = vshll.u32 %v509, 30
    %v511 = vsub.s32 %v507, %v510
    %vm512 = vcmp.lt.s32.totalorder %v511, 0
    %v513 = vsub.s32 0, %v511
    %v514 = vsel %vm512, %v513, %v511
    %v515 = vclz %v514
    %v516 = vsub.s32 %v515, 2
    %vm517 = vcmp.gt.s32.totalorder 0, %v516
    %v518 = vsel %vm517, 0, %v516
    %v519 = vsub.s32 32, %v518
    %v520 = vshll.u32 %v511, %v518
    %v521 = vshrl.u32 %v503, %v519
    %v522 = vor.u32 %v520, %v521
    %v523 = vsub.s32 4294967266, %v518
    %v524 = vadd.s32 %v523, 127
    %v525 = vshll.u32 %v524, 23
    %v526 = vor.u32 4788187, %v525
    %v527 = vand.u32 2147483647, %v526
    %v529 = vcvt.s32.f32 %v522
    %v530 = vmul.f32 %v529, %v527
    %v531 = vxor.u32 %v530, 2147483648
    %v532 = vsel %vm449, %v531, %v530
    %v533 = vsub.s32 4, %v509
    %v534 = vsel %vm449, %v533, %v509
    %v535 = vsel %vm448, %v131, %v532
    %v536 = vsel %vm448, 0, %v534
    %v537 = vcosq.f32.pop %v535
    %v538 = vsinq.f32.pop %v535
    %vm539 = vweird.f32 %v131
    %v540 = vadd.s32 %v536, 3
    %v541 = vand.u32 %v540, 3
    %vm542 = vcmp.lt.s32.totalorder %v541, 2
    %vm543 = vcmp.eq.s32.totalorder %v541, 0
    %v544 = vxor.u32 %v538, 2147483648
    %v545 = vsel %vm543, %v537, %v544
    %vm546 = vcmp.eq.s32.totalorder %v541, 2
    %v547 = vxor.u32 %v537, 2147483648
    %v548 = vsel %vm546, %v547, %v538
    %v549 = vsel %vm542, %v545, %v548
    %v550 = vsel %vm539, nan, %v549
    %v551 = vand.u32 2147483647, %v132
    %vm552 = vcmp.le.f32.partialorder %v551, 0.7853982
    %vm553 = vcmp.lt.s32.totalorder %v132, 0
    %v554 = vand.u32 %v132, 2139095040
    %v555 = vshrl.u32 %v554, 23
    %v556 = vsub.s32 %v555, 127
    %v557 = vand.u32 2147483647, %v132
    %v558 = vand.u32 %v557, 8388607
    %v559 = vor.u32 %v558, 8388608
    %v560 = vsub.s32 0, %v559
    %v561 = vadd.s32 %v556, 1
    %vm562 = vcmp.gt.s32.totalorder %v561, 0
    %v563 = vsel %vm562, %v561, 0
    %v564 = vshrl.u32 %v563, 5
    %v565 = vand.u32 %v563, 31
    %v566 = vsub.s32 32, %v565
    %v567 = vshrl.u32 683565275, %v566
    %v568 = vshll.u32 683565275, %v565
    %v569 = vshrl.u32 2475754826, %v566
    %v570 = vor.u32 %v568, %v569
    %v571 = vshll.u32 2475754826, %v565
    %v572 = vshrl.u32 2131351028, %v566
    %v573 = vor.u32 %v571, %v572
    %v574 = vshll.u32 2131351028, %v565
    %v575 = vshrl.u32 2102212464, %v566
    %v576 = vor.u32 %v574, %v575
    %v577 = vshll.u32 2102212464, %v565
    %v578 = vshrl.u32 920167782, %v566
    %v579 = vor.u32 %v577, %v578
    %v580 = vshll.u32 920167782, %v565
    %v581 = vshrl.u32 1326507024, %v566
    %v582 = vor.u32 %v580, %v581
    %vm583 = vcmp.lt.s32.totalorder %v564, 1
    %vm584 = vcmp.lt.s32.totalorder %v564, 2
    %vm585 = vcmp.lt.s32.totalorder %v564, 3
    %vm586 = vcmp.lt.s32.totalorder %v564, 4
    %v587 = vsel %vm583, %v567, %v570
    %v588 = vsel %vm586, %v576, 2102212464
    %v589 = vsel %vm585, %v573, %v588
    %v590 = vsel %vm584, %v587, %v589
    %v591 = vsel %vm583, %v570, %v573
    %v592 = vsel %vm586, %v579, 920167782
    %v593 = vsel %vm585, %v576, %v592
    %v594 = vsel %vm584, %v591, %v593
    %v595 = vsel %vm583, %v573, %v576
    %v596 = vsel %vm586, %v582, 1326507024
    %v597 = vsel %vm585, %v579, %v596
    %v598 = vsel %vm584, %v595, %v597
    %v599 = vshll.u32 %v559, 8
    %v600 = vmul.u32.u64.compose %v599, %v598
    %v601 = vextract.low.u32 %v600
    %v602 = vextract.high.u32 %v600
    %v603 = vmul.u32.u64.compose %v599, %v594
    %v604 = vextract.low.u32 %v603
    %v605 = vextract.high.u32 %v603
    %v606 = vmul.u32 %v599, %v590
    %v607 = vadd.s32 %v602, %v604
    %vm608 = vc.u32 %v602, %v604
    %v609 = vadd.s32 %v605, 1
    %v610 = vsel %vm608, %v609, %v605
    %v611 = vadd.s32 %v606, %v610
    %v612 = vadd.s32 %v611, 536870912
    %v613 = vshrl.u32 %v612, 30
    %v614 = vshll.u32 %v613, 30
    %v615 = vsub.s32 %v611, %v614
    %vm616 = vcmp.lt.s32.totalorder %v615, 0
    %v617 = vsub.s32 0, %v615
    %v618 = vsel %vm616, %v617, %v615
    %v619 = vclz %v618
    %v620 = vsub.s32 %v619, 2
    %vm621 = vcmp.gt.s32.totalorder 0, %v620
    %v622 = vsel %vm621, 0, %v620
    %v623 = vsub.s32 32, %v622
    %v624 = vshll.u32 %v615, %v622
    %v625 = vshrl.u32 %v607, %v623
    %v626 = vor.u32 %v624, %v625
    %v627 = vsub.s32 4294967266, %v622
    %v628 = vadd.s32 %v627, 127
    %v629 = vshll.u32 %v628, 23
    %v630 = vor.u32 4788187, %v629
    %v631 = vand.u32 2147483647, %v630
    %v633 = vcvt.s32.f32 %v626
    %v634 = vmul.f32 %v633, %v631
    %v635 = vxor.u32 %v634, 2147483648
    %v636 = vsel %vm553, %v635, %v634
    %v637 = vsub.s32 4, %v613
    %v638 = vsel %vm553, %v637, %v613
    %v639 = vsel %vm552, %v132, %v636
    %v640 = vsel %vm552, 0, %v638
    %v641 = vcosq.f32.pop %v639
    %v642 = vsinq.f32.pop %v639
    %vm643 = vweird.f32 %v132
    %v644 = vadd.s32 %v640, 3
    %v645 = vand.u32 %v644, 3
    %vm646 = vcmp.lt.s32.totalorder %v645, 2
    %vm647 = vcmp.eq.s32.totalorder %v645, 0
    %v648 = vxor.u32 %v642, 2147483648
    %v649 = vsel %vm647, %v641, %v648
    %vm650 = vcmp.eq.s32.totalorder %v645, 2
    %v651 = vxor.u32 %v641, 2147483648
    %v652 = vsel %vm650, %v651, %v642
    %v653 = vsel %vm646, %v649, %v652
    %v654 = vsel %vm643, nan, %v653
    %v655 = vand.u32 2147483647, %v133
    %vm656 = vcmp.le.f32.partialorder %v655, 0.7853982
    %vm657 = vcmp.lt.s32.totalorder %v133, 0
    %v658 = vand.u32 %v133, 2139095040
    %v659 = vshrl.u32 %v658, 23
    %v660 = vsub.s32 %v659, 127
    %v661 = vand.u32 2147483647, %v133
    %v662 = vand.u32 %v661, 8388607
    %v663 = vor.u32 %v662, 8388608
    %v664 = vsub.s32 0, %v663
    %v665 = vadd.s32 %v660, 1
    %vm666 = vcmp.gt.s32.totalorder %v665, 0
    %v667 = vsel %vm666, %v665, 0
    %v668 = vshrl.u32 %v667, 5
    %v669 = vand.u32 %v667, 31
    %v670 = vsub.s32 32, %v669
    %v671 = vshrl.u32 683565275, %v670
    %v672 = vshll.u32 683565275, %v669
    %v673 = vshrl.u32 2475754826, %v670
    %v674 = vor.u32 %v672, %v673
    %v675 = vshll.u32 2475754826, %v669
    %v676 = vshrl.u32 2131351028, %v670
    %v677 = vor.u32 %v675, %v676
    %v678 = vshll.u32 2131351028, %v669
    %v679 = vshrl.u32 2102212464, %v670
    %v680 = vor.u32 %v678, %v679
    %v681 = vshll.u32 2102212464, %v669
    %v682 = vshrl.u32 920167782, %v670
    %v683 = vor.u32 %v681, %v682
    %v684 = vshll.u32 920167782, %v669
    %v685 = vshrl.u32 1326507024, %v670
    %v686 = vor.u32 %v684, %v685
    %vm687 = vcmp.lt.s32.totalorder %v668, 1
    %vm688 = vcmp.lt.s32.totalorder %v668, 2
    %vm689 = vcmp.lt.s32.totalorder %v668, 3
    %vm690 = vcmp.lt.s32.totalorder %v668, 4
    %v691 = vsel %vm687, %v671, %v674
    %v692 = vsel %vm690, %v680, 2102212464
    %v693 = vsel %vm689, %v677, %v692
    %v694 = vsel %vm688, %v691, %v693
    %v695 = vsel %vm687, %v674, %v677
    %v696 = vsel %vm690, %v683, 920167782
    %v697 = vsel %vm689, %v680, %v696
    %v698 = vsel %vm688, %v695, %v697
    %v699 = vsel %vm687, %v677, %v680
    %v700 = vsel %vm690, %v686, 1326507024
    %v701 = vsel %vm689, %v683, %v700
    %v702 = vsel %vm688, %v699, %v701
    %v703 = vshll.u32 %v663, 8
    %v704 = vmul.u32.u64.compose %v703, %v702
    %v705 = vextract.low.u32 %v704
    %v706 = vextract.high.u32 %v704
    %v707 = vmul.u32.u64.compose %v703, %v698
    %v708 = vextract.low.u32 %v707
    %v709 = vextract.high.u32 %v707
    %v710 = vmul.u32 %v703, %v694
    %v711 = vadd.s32 %v706, %v708
    %vm712 = vc.u32 %v706, %v708
    %v713 = vadd.s32 %v709, 1
    %v714 = vsel %vm712, %v713, %v709
    %v715 = vadd.s32 %v710, %v714
    %v716 = vadd.s32 %v715, 536870912
    %v717 = vshrl.u32 %v716, 30
    %v718 = vshll.u32 %v717, 30
    %v719 = vsub.s32 %v715, %v718
    %vm720 = vcmp.lt.s32.totalorder %v719, 0
    %v721 = vsub.s32 0, %v719
    %v722 = vsel %vm720, %v721, %v719
    %v723 = vclz %v722
    %v724 = vsub.s32 %v723, 2
    %vm725 = vcmp.gt.s32.totalorder 0, %v724
    %v726 = vsel %vm725, 0, %v724
    %v727 = vsub.s32 32, %v726
    %v728 = vshll.u32 %v719, %v726
    %v729 = vshrl.u32 %v711, %v727
    %v730 = vor.u32 %v728, %v729
    %v731 = vsub.s32 4294967266, %v726
    %v732 = vadd.s32 %v731, 127
    %v733 = vshll.u32 %v732, 23
    %v734 = vor.u32 4788187, %v733
    %v735 = vand.u32 2147483647, %v734
    %v737 = vcvt.s32.f32 %v730
    %v738 = vmul.f32 %v737, %v735
    %v739 = vxor.u32 %v738, 2147483648
    %v740 = vsel %vm657, %v739, %v738
    %v741 = vsub.s32 4, %v717
    %v742 = vsel %vm657, %v741, %v717
    %v743 = vsel %vm656, %v133, %v740
    %v744 = vsel %vm656, 0, %v742
    %v745 = vcosq.f32.pop %v743
    %v746 = vsinq.f32.pop %v743
    %vm747 = vweird.f32 %v133
    %v748 = vadd.s32 %v744, 3
    %v749 = vand.u32 %v748, 3
    %vm750 = vcmp.lt.s32.totalorder %v749, 2
    %vm751 = vcmp.eq.s32.totalorder %v749, 0
    %v752 = vxor.u32 %v746, 2147483648
    %v753 = vsel %vm751, %v745, %v752
    %vm754 = vcmp.eq.s32.totalorder %v749, 2
    %v755 = vxor.u32 %v745, 2147483648
    %v756 = vsel %vm754, %v755, %v746
    %v757 = vsel %vm750, %v753, %v756
    %v758 = vsel %vm747, nan, %v757
    %v759 = vand.u32 2147483647, %v134
    %vm760 = vcmp.le.f32.partialorder %v759, 0.7853982
    %vm761 = vcmp.lt.s32.totalorder %v134, 0
    %v762 = vand.u32 %v134, 2139095040
    %v763 = vshrl.u32 %v762, 23
    %v764 = vsub.s32 %v763, 127
    %v765 = vand.u32 2147483647, %v134
    %v766 = vand.u32 %v765, 8388607
    %v767 = vor.u32 %v766, 8388608
    %v768 = vsub.s32 0, %v767
    %v769 = vadd.s32 %v764, 1
    %vm770 = vcmp.gt.s32.totalorder %v769, 0
    %v771 = vsel %vm770, %v769, 0
    %v772 = vshrl.u32 %v771, 5
    %v773 = vand.u32 %v771, 31
    %v774 = vsub.s32 32, %v773
    %v775 = vshrl.u32 683565275, %v774
    %v776 = vshll.u32 683565275, %v773
    %v777 = vshrl.u32 2475754826, %v774
    %v778 = vor.u32 %v776, %v777
    %v779 = vshll.u32 2475754826, %v773
    %v780 = vshrl.u32 2131351028, %v774
    %v781 = vor.u32 %v779, %v780
    %v782 = vshll.u32 2131351028, %v773
    %v783 = vshrl.u32 2102212464, %v774
    %v784 = vor.u32 %v782, %v783
    %v785 = vshll.u32 2102212464, %v773
    %v786 = vshrl.u32 920167782, %v774
    %v787 = vor.u32 %v785, %v786
    %v788 = vshll.u32 920167782, %v773
    %v789 = vshrl.u32 1326507024, %v774
    %v790 = vor.u32 %v788, %v789
    %vm791 = vcmp.lt.s32.totalorder %v772, 1
    %vm792 = vcmp.lt.s32.totalorder %v772, 2
    %vm793 = vcmp.lt.s32.totalorder %v772, 3
    %vm794 = vcmp.lt.s32.totalorder %v772, 4
    %v795 = vsel %vm791, %v775, %v778
    %v796 = vsel %vm794, %v784, 2102212464
    %v797 = vsel %vm793, %v781, %v796
    %v798 = vsel %vm792, %v795, %v797
    %v799 = vsel %vm791, %v778, %v781
    %v800 = vsel %vm794, %v787, 920167782
    %v801 = vsel %vm793, %v784, %v800
    %v802 = vsel %vm792, %v799, %v801
    %v803 = vsel %vm791, %v781, %v784
    %v804 = vsel %vm794, %v790, 1326507024
    %v805 = vsel %vm793, %v787, %v804
    %v806 = vsel %vm792, %v803, %v805
    %v807 = vshll.u32 %v767, 8
    %v808 = vmul.u32.u64.compose %v807, %v806
    %v809 = vextract.low.u32 %v808
    %v810 = vextract.high.u32 %v808
    %v811 = vmul.u32.u64.compose %v807, %v802
    %v812 = vextract.low.u32 %v811
    %v813 = vextract.high.u32 %v811
    %v814 = vmul.u32 %v807, %v798
    %v815 = vadd.s32 %v810, %v812
    %vm816 = vc.u32 %v810, %v812
    %v817 = vadd.s32 %v813, 1
    %v818 = vsel %vm816, %v817, %v813
    %v819 = vadd.s32 %v814, %v818
    %v820 = vadd.s32 %v819, 536870912
    %v821 = vshrl.u32 %v820, 30
    %v822 = vshll.u32 %v821, 30
    %v823 = vsub.s32 %v819, %v822
    %vm824 = vcmp.lt.s32.totalorder %v823, 0
    %v825 = vsub.s32 0, %v823
    %v826 = vsel %vm824, %v825, %v823
    %v827 = vclz %v826
    %v828 = vsub.s32 %v827, 2
    %vm829 = vcmp.gt.s32.totalorder 0, %v828
    %v830 = vsel %vm829, 0, %v828
    %v831 = vsub.s32 32, %v830
    %v832 = vshll.u32 %v823, %v830
    %v833 = vshrl.u32 %v815, %v831
    %v834 = vor.u32 %v832, %v833
    %v835 = vsub.s32 4294967266, %v830
    %v836 = vadd.s32 %v835, 127
    %v837 = vshll.u32 %v836, 23
    %v838 = vor.u32 4788187, %v837
    %v839 = vand.u32 2147483647, %v838
    %v841 = vcvt.s32.f32 %v834
    %v842 = vmul.f32 %v841, %v839
    %v843 = vxor.u32 %v842, 2147483648
    %v844 = vsel %vm761, %v843, %v842
    %v845 = vsub.s32 4, %v821
    %v846 = vsel %vm761, %v845, %v821
    %v847 = vsel %vm760, %v134, %v844
    %v848 = vsel %vm760, 0, %v846
    %v849 = vcosq.f32.pop %v847
    %v850 = vsinq.f32.pop %v847
    %vm851 = vweird.f32 %v134
    %v852 = vadd.s32 %v848, 3
    %v853 = vand.u32 %v852, 3
    %vm854 = vcmp.lt.s32.totalorder %v853, 2
    %vm855 = vcmp.eq.s32.totalorder %v853, 0
    %v856 = vxor.u32 %v850, 2147483648
    %v857 = vsel %vm855, %v849, %v856
    %vm858 = vcmp.eq.s32.totalorder %v853, 2
    %v859 = vxor.u32 %v849, 2147483648
    %v860 = vsel %vm858, %v859, %v850
    %v861 = vsel %vm854, %v857, %v860
    %v862 = vsel %vm851, nan, %v861
    %864 = vset.pattern.permute.xlu0 0
    %865 = vperm.xlu0 %864, %v29
    %v866 = vpop.permute.xlu0 %865
    %869 = vset.pattern.permute.xlu0 0
    %870 = vperm.xlu0 %869, %v30
    %v871 = vpop.permute.xlu0 %870
    %874 = vset.pattern.permute.xlu0 0
    %875 = vperm.xlu0 %874, %v31
    %v876 = vpop.permute.xlu0 %875
    %879 = vset.pattern.permute.xlu0 0
    %880 = vperm.xlu0 %879, %v32
    %v881 = vpop.permute.xlu0 %880
    %884 = vset.pattern.permute.xlu0 0
    %885 = vperm.xlu0 %884, %v33
    %v886 = vpop.permute.xlu0 %885
    %889 = vset.pattern.permute.xlu0 0
    %890 = vperm.xlu0 %889, %v34
    %v891 = vpop.permute.xlu0 %890
    %894 = vset.pattern.permute.xlu0 0
    %895 = vperm.xlu0 %894, %v35
    %v896 = vpop.permute.xlu0 %895
    %v898 = vmul.f32 %v866, %v238
    %v899 = vmul.f32 %v871, %v342
    %v900 = vmul.f32 %v876, %v446
    %v901 = vmul.f32 %v881, %v550
    %v902 = vmul.f32 %v886, %v654
    %v903 = vmul.f32 %v891, %v758
    %v904 = vmul.f32 %v896, %v862
    %v905 = vadd.f32 %v898, %v899
    %v906 = vadd.f32 %v905, %v900
    %v907 = vadd.f32 %v906, %v901
    %v908 = vadd.f32 %v907, %v902
    %v909 = vadd.f32 %v908, %v903
    %vm910 = vcmask 1041408
    %v911 = vsel %vm910, %v904, 0.0
    %v912 = vadd.f32 %v909, %v911
    %v913 = vrot.slane %v912, 4
    %v914 = vadd.f32 %v912, %v913
    %v915 = vrot.slane %v914, 2
    %v916 = vadd.f32 %v914, %v915
    %v917 = vrot.slane %v916, 1
    %v918 = vadd.f32 %v916, %v917
    %v919 = vstv %s43
    %v920 = vadd.f32 %v918, %v919
    %921 = vst [vmem:[#allocation3] sm:$0x1] %v920
    // Predicated region
    $region22: #{tpu_custom_call.1} parent=1 // pred_check
      _
    $region23: #{tpu_custom_call.1} parent=1 // pred_check_branch
      %923 = sbr.rel (0) target = $region25
    $region24: #{tpu_custom_call.1} parent=1 // pred_region
      %s925 = ssub.s32 16, 16
      %926 = vsyncadd [#allocation4], %s925
      %s928 = sshll.u32 [#allocation3], 4
      %s929 = int_to_ptr.vmem [resolvable:$true] %s928
      %931 = dma.vmem_to_hbm [thread:$0]  %s929, 16, %s5, [#allocation4]
    $region25: #{tpu_custom_call.1} parent=1 // pred_fallthru
      _
    // Predicated region
    $region26: #{tpu_custom_call.1} parent=1 // pred_check
      _
    $region27: #{tpu_custom_call.1} parent=1 // pred_check_branch
      %933 = sbr.rel (0) target = $region29
    $region28: #{tpu_custom_call.1} parent=1 // pred_region
      %934 = dma.done [#allocation4], 16
    $region29: #{tpu_custom_call.1} parent=1 // pred_fallthru
      _
    %935 = vsyncpa [#allocation4], 1

</llo_original>
